<compile_context>
chip_gen: v5e
topology: v5e:2x2
jax: 0.10.0
libtpu: 0.0.40
codegen_flags: <defaults>
</compile_context>

<pallas_src>
import functools

import jax
import jax.numpy as jnp
from jax.experimental import pallas as pl
from jax.experimental.pallas import tpu as pltpu


def _round_up(x: int, m: int) -> int:
    return ((x + m - 1) // m) * m


def _cdiv(a: int, b: int) -> int:
    return (a + b - 1) // b


def _epilogue_dtype():
    """bf16 bias+ReLU on chips with a bf16 VPU (v6e/v7x); f32 otherwise."""
    try:
        kind = jax.devices()[0].device_kind.lower()
    except Exception:  # pragma: no cover - defensive
        return jnp.float32
    return jnp.bfloat16 if ("v6" in kind or "v7" in kind) else jnp.float32


# ---------------------------------------------------------------------------
# Kernel: one batch tile of the full 3-layer MLP.
#   x_ref : (TB, d_in)      f32   (native feature width, no wrapper pad)
#   w*_ref: bf16 padded weights [in_pad, out_pad]; b*_ref: f32 (1, out_pad)
#   o_ref : (TB, d_out_pad) bf16  (lane-dense, 128-wide)
# ---------------------------------------------------------------------------
def actor_kernel(x_ref, w1_ref, b1_ref, w2_ref, b2_ref, w3_ref, b3_ref, o_ref,
                 *, epilogue_dtype):
    # Layer 1: Linear + ReLU. State arrives at native K; pad K in-register
    # only if w1 was sublane-rounded past d_in (zero rows -> exact).
    x = x_ref[...].astype(jnp.bfloat16)
    k_extra = w1_ref.shape[0] - x.shape[1]
    if k_extra:
        x = jnp.pad(x, ((0, 0), (0, k_extra)))
    h1 = jnp.dot(x, w1_ref[...], preferred_element_type=jnp.float32)
    h1 = jnp.maximum(
        h1.astype(epilogue_dtype) + b1_ref[...].astype(epilogue_dtype), 0
    ).astype(jnp.bfloat16)

    # Layer 2: Linear + ReLU.
    h2 = jnp.dot(h1, w2_ref[...], preferred_element_type=jnp.float32)
    h2 = jnp.maximum(
        h2.astype(epilogue_dtype) + b2_ref[...].astype(epilogue_dtype), 0
    ).astype(jnp.bfloat16)

    # Layer 3: Linear + Tanh (tanh on the EUP in f32; store lane-dense bf16).
    h3 = jnp.dot(h2, w3_ref[...], preferred_element_type=jnp.float32)
    o_ref[...] = jnp.tanh(h3 + b3_ref[...]).astype(o_ref.dtype)


# ---------------------------------------------------------------------------
# Wrapper: pads only the batch (to 8-row sublane multiples), tiles it
# adaptively, keeps weights VMEM-resident across tiles, slices the logical
# output back out.
# ---------------------------------------------------------------------------
def actor_forward(state, params, output_action, *, batch_tile=1024,
                  out_dtype=jnp.bfloat16):
    w1, b1 = params["w1"], params["b1"]
    w2, b2 = params["w2"], params["b2"]
    w3, b3 = params["w3"], params["b3"]

    B, d_in = state.shape
    d_in_pad = w1.shape[0]          # round_up(d_in, 16), NOT 128
    h1_pad = w1.shape[1]            # 512
    h2_pad = w2.shape[1]            # 384
    d_out_pad = w3.shape[1]         # round_up(output_action, 128)

    # --- Adaptive batch tiling -------------------------------------------
    # Sublane-align the batch; split into >=2 grid steps whenever possible so
    # v7x's two TensorCores both participate; never round the batch up to a
    # full batch_tile multiple (tb is derived from cdiv, so padding waste is
    # at most 8 rows per tile).
    b_pad = _round_up(max(B, 8), 8)
    if b_pad >= 16:
        g = max(2, _cdiv(b_pad, batch_tile))
    else:
        g = 1
    tb = _round_up(_cdiv(b_pad, g), 8)
    b_pad = g * tb
    grid = (g,)

    # Pad only the batch rows (zeros are exact through bias/ReLU/tanh and are
    # sliced off below). No feature-dim pad: state streams at native width.
    x = state.astype(jnp.float32)
    if b_pad != B:
        x = jnp.pad(x, ((0, b_pad - B), (0, 0)))

    weight_bytes = 2 * (w1.size + w2.size + w3.size)            # bf16
    bias_bytes = 4 * (b1.size + b2.size + b3.size)              # f32
    io_bytes = 4 * x.size + jnp.dtype(out_dtype).itemsize * b_pad * d_out_pad
    cost = pl.CostEstimate(
        flops=2 * b_pad * (d_in_pad * h1_pad + h1_pad * h2_pad
                           + h2_pad * d_out_pad),
        transcendentals=b_pad * d_out_pad,
        bytes_accessed=weight_bytes + bias_bytes + io_bytes,
    )

    # Grid-invariant index maps -> weights/biases stay VMEM-resident.
    resident = lambda arr: pl.BlockSpec(arr.shape, lambda i: (0,) * arr.ndim)

    kernel = functools.partial(actor_kernel, epilogue_dtype=_epilogue_dtype())

    out_pad = pl.pallas_call(
        kernel,
        out_shape=jax.ShapeDtypeStruct((b_pad, d_out_pad), out_dtype),
        grid_spec=pltpu.PrefetchScalarGridSpec(
            num_scalar_prefetch=0,
            grid=grid,
            in_specs=[
                pl.BlockSpec((tb, d_in), lambda i: (i, 0)),  # state, native K
                resident(w1), resident(b1),
                resident(w2), resident(b2),
                resident(w3), resident(b3),
            ],
            out_specs=pl.BlockSpec((tb, d_out_pad), lambda i: (i, 0)),
        ),
        compiler_params=pltpu.CompilerParams(
            dimension_semantics=("parallel",),   # shard batch tiles over TCs
        ),
        cost_estimate=cost,
    )(x, w1, b1, w2, b2, w3, b3)

    return out_pad[:B, :output_action]


# ---------------------------------------------------------------------------
# Parameter init: PyTorch nn.Linear default U(-1/sqrt(fan_in), 1/sqrt(fan_in)),
# stored [in, out]. Feature pads: d_in -> x16 (bf16 sublane), 400 -> 512,
# 300 -> 384, out -> x128. Weights bf16, biases f32.
# ---------------------------------------------------------------------------
def init_actor_params(key, input_state, output_action):
    logical = [(input_state, 400), (400, 300), (300, output_action)]
    padded = [(_round_up(input_state, 16), 512),
              (512, 384),
              (384, _round_up(output_action, 128))]
    keys = jax.random.split(key, 6)
    params = {}
    for i, ((fi, fo), (pi, po)) in enumerate(zip(logical, padded), start=1):
        bound = 1.0 / float(fi) ** 0.5
        w = jax.random.uniform(keys[2 * (i - 1)], (fi, fo), jnp.float32,
                               -bound, bound)
        b = jax.random.uniform(keys[2 * (i - 1) + 1], (fo,), jnp.float32,
                               -bound, bound)
        w_pad = jnp.zeros((pi, po), jnp.float32).at[:fi, :fo].set(w)
        b_pad = jnp.zeros((1, po), jnp.float32).at[0, :fo].set(b)
        params[f"w{i}"] = w_pad.astype(jnp.bfloat16)   # bf16 weights
        params[f"b{i}"] = b_pad                        # f32 biases
    return params


# ---------------------------------------------------------------------------
# Pure-JAX f32 reference (same bf16-rounded weights).
# ---------------------------------------------------------------------------
def actor_reference(state, params, output_action):
    w1 = params["w1"].astype(jnp.float32)
    w2 = params["w2"].astype(jnp.float32)
    w3 = params["w3"].astype(jnp.float32)
    x = state
    if w1.shape[0] > state.shape[1]:
        x = jnp.pad(state, ((0, 0), (0, w1.shape[0] - state.shape[1])))
    h1 = jnp.maximum(x @ w1 + params["b1"], 0.0)
    h2 = jnp.maximum(h1 @ w2 + params["b2"], 0.0)
    out = jnp.tanh(h2 @ w3 + params["b3"])
    return out[:, :output_action]


if __name__ == "__main__":
    key = jax.random.PRNGKey(0)
    k_params, k_state = jax.random.split(key)

    batch = 8
    input_state = 32       # state dimension
    output_action = 8      # action dimension

    params = init_actor_params(k_params, input_state, output_action)
    state = jax.random.normal(k_state, (batch, input_state), jnp.float32)

    fwd = jax.jit(functools.partial(actor_forward, output_action=output_action))
    out = jax.block_until_ready(fwd(state, params))

    ref = actor_reference(state, params, output_action)
    assert out.shape == (batch, output_action), out.shape
    # bf16 matmul operands / bf16 output -> loosened tolerance ([-1, 1] range).
    assert jnp.allclose(out.astype(jnp.float32), ref, atol=3e-2, rtol=3e-2), \
        "mismatch vs reference"

    print("KERNEL_OK")
</pallas_src>

<mosaic_0001>
module attributes {stable_mosaic.version = 11 : i64} {
  func.func @actor_kernel(%arg0: i32, %arg1: memref<8x32xf32, #tpu.memory_space<vmem>>, %arg2: memref<32x512xbf16, #tpu.memory_space<vmem>>, %arg3: memref<1x512xf32, #tpu.memory_space<vmem>>, %arg4: memref<512x384xbf16, #tpu.memory_space<vmem>>, %arg5: memref<1x384xf32, #tpu.memory_space<vmem>>, %arg6: memref<384x128xbf16, #tpu.memory_space<vmem>>, %arg7: memref<1x128xf32, #tpu.memory_space<vmem>>, %arg8: memref<8x128xbf16, #tpu.memory_space<vmem>>) attributes {dimension_semantics = [#tpu.dimension_semantics<parallel>], iteration_bounds = array<i64: 1>, scalar_prefetch = 0 : i64, scratch_operands = 0 : i64, tpu.core_type = #tpu.core_type<tc>, window_params = [{transform_indices = @transform_0, window_bounds = array<i64: 8, 32>}, {pipeline_mode = #tpu.pipeline_mode<synchronous>, transform_indices = @transform_1, window_bounds = array<i64: 32, 512>}, {pipeline_mode = #tpu.pipeline_mode<synchronous>, transform_indices = @transform_2, window_bounds = array<i64: 1, 512>}, {pipeline_mode = #tpu.pipeline_mode<synchronous>, transform_indices = @transform_3, window_bounds = array<i64: 512, 384>}, {pipeline_mode = #tpu.pipeline_mode<synchronous>, transform_indices = @transform_4, window_bounds = array<i64: 1, 384>}, {pipeline_mode = #tpu.pipeline_mode<synchronous>, transform_indices = @transform_5, window_bounds = array<i64: 384, 128>}, {pipeline_mode = #tpu.pipeline_mode<synchronous>, transform_indices = @transform_6, window_bounds = array<i64: 1, 128>}, {transform_indices = @transform_7, window_bounds = array<i64: 8, 128>}]} {
    %c0 = arith.constant 0 : index
    %c0_0 = arith.constant 0 : index
    %0 = vector.load %arg1[%c0, %c0_0] : memref<8x32xf32, #tpu.memory_space<vmem>>, vector<8x32xf32>
    %1 = arith.truncf %0 : vector<8x32xf32> to vector<8x32xbf16>
    %c0_1 = arith.constant 0 : index
    %c0_2 = arith.constant 0 : index
    %2 = vector.load %arg2[%c0_1, %c0_2] : memref<32x512xbf16, #tpu.memory_space<vmem>>, vector<32x512xbf16>
    %cst = arith.constant dense<0.000000e+00> : vector<8x512xf32>
    %3 = tpu.matmul %1, %2, %cst {dimension_numbers = #tpu.dot_dimension_numbers<[1], [0], [0], [1], [0, 0, 1, 1], [], []>} : vector<8x32xbf16>, vector<32x512xbf16>, vector<8x512xf32> -> vector<8x512xf32>
    %c0_3 = arith.constant 0 : index
    %c0_4 = arith.constant 0 : index
    %4 = vector.load %arg3[%c0_3, %c0_4] : memref<1x512xf32, #tpu.memory_space<vmem>>, vector<1x512xf32>
    %5 = vector.broadcast %4 : vector<1x512xf32> to vector<8x512xf32>
    %6 = arith.addf %3, %5 : vector<8x512xf32>
    %cst_5 = arith.constant 0.000000e+00 : f32
    %7 = vector.broadcast %cst_5 : f32 to vector<8x512xf32>
    %8 = arith.maximumf %6, %7 : vector<8x512xf32>
    %9 = arith.truncf %8 : vector<8x512xf32> to vector<8x512xbf16>
    %c0_6 = arith.constant 0 : index
    %c0_7 = arith.constant 0 : index
    %10 = vector.load %arg4[%c0_6, %c0_7] : memref<512x384xbf16, #tpu.memory_space<vmem>>, vector<512x384xbf16>
    %cst_8 = arith.constant dense<0.000000e+00> : vector<8x384xf32>
    %11 = tpu.matmul %9, %10, %cst_8 {dimension_numbers = #tpu.dot_dimension_numbers<[1], [0], [0], [1], [0, 0, 1, 1], [], []>} : vector<8x512xbf16>, vector<512x384xbf16>, vector<8x384xf32> -> vector<8x384xf32>
    %c0_9 = arith.constant 0 : index
    %c0_10 = arith.constant 0 : index
    %12 = vector.load %arg5[%c0_9, %c0_10] : memref<1x384xf32, #tpu.memory_space<vmem>>, vector<1x384xf32>
    %13 = vector.broadcast %12 : vector<1x384xf32> to vector<8x384xf32>
    %14 = arith.addf %11, %13 : vector<8x384xf32>
    %cst_11 = arith.constant 0.000000e+00 : f32
    %15 = vector.broadcast %cst_11 : f32 to vector<8x384xf32>
    %16 = arith.maximumf %14, %15 : vector<8x384xf32>
    %17 = arith.truncf %16 : vector<8x384xf32> to vector<8x384xbf16>
    %c0_12 = arith.constant 0 : index
    %c0_13 = arith.constant 0 : index
    %18 = vector.load %arg6[%c0_12, %c0_13] : memref<384x128xbf16, #tpu.memory_space<vmem>>, vector<384x128xbf16>
    %cst_14 = arith.constant dense<0.000000e+00> : vector<8x128xf32>
    %19 = tpu.matmul %17, %18, %cst_14 {dimension_numbers = #tpu.dot_dimension_numbers<[1], [0], [0], [1], [0, 0, 1, 1], [], []>} : vector<8x384xbf16>, vector<384x128xbf16>, vector<8x128xf32> -> vector<8x128xf32>
    %c0_15 = arith.constant 0 : index
    %c0_16 = arith.constant 0 : index
    %20 = vector.load %arg7[%c0_15, %c0_16] : memref<1x128xf32, #tpu.memory_space<vmem>>, vector<1x128xf32>
    %21 = vector.broadcast %20 : vector<1x128xf32> to vector<8x128xf32>
    %22 = arith.addf %19, %21 : vector<8x128xf32>
    %23 = math.tanh %22 : vector<8x128xf32>
    %24 = arith.truncf %23 : vector<8x128xf32> to vector<8x128xbf16>
    %c0_17 = arith.constant 0 : index
    %c0_18 = arith.constant 0 : index
    %25 = vector.load %arg8[%c0_17, %c0_18] : memref<8x128xbf16, #tpu.memory_space<vmem>>, vector<8x128xbf16>
    tpu.vector_store %arg8[%c0_17, %c0_18], %24 {strides = array<i32>} : memref<8x128xbf16, #tpu.memory_space<vmem>>, vector<8x128xbf16>,
    return
  }
  func.func @transform_0(%arg0: i32) -> (i32, i32) {
    %c0_i32 = arith.constant 0 : i32
    %c0_i32_0 = arith.constant 0 : i32
    return %arg0, %c0_i32 : i32, i32
  }
  func.func @transform_1(%arg0: i32) -> (i32, i32) {
    %c0_i32 = arith.constant 0 : i32
    %c0_i32_0 = arith.constant 0 : i32
    %c0_i32_1 = arith.constant 0 : i32
    return %c0_i32, %c0_i32_0 : i32, i32
  }
  func.func @transform_2(%arg0: i32) -> (i32, i32) {
    %c0_i32 = arith.constant 0 : i32
    %c0_i32_0 = arith.constant 0 : i32
    %c0_i32_1 = arith.constant 0 : i32
    return %c0_i32, %c0_i32_0 : i32, i32
  }
  func.func @transform_3(%arg0: i32) -> (i32, i32) {
    %c0_i32 = arith.constant 0 : i32
    %c0_i32_0 = arith.constant 0 : i32
    %c0_i32_1 = arith.constant 0 : i32
    return %c0_i32, %c0_i32_0 : i32, i32
  }
  func.func @transform_4(%arg0: i32) -> (i32, i32) {
    %c0_i32 = arith.constant 0 : i32
    %c0_i32_0 = arith.constant 0 : i32
    %c0_i32_1 = arith.constant 0 : i32
    return %c0_i32, %c0_i32_0 : i32, i32
  }
  func.func @transform_5(%arg0: i32) -> (i32, i32) {
    %c0_i32 = arith.constant 0 : i32
    %c0_i32_0 = arith.constant 0 : i32
    %c0_i32_1 = arith.constant 0 : i32
    return %c0_i32, %c0_i32_0 : i32, i32
  }
  func.func @transform_6(%arg0: i32) -> (i32, i32) {
    %c0_i32 = arith.constant 0 : i32
    %c0_i32_0 = arith.constant 0 : i32
    %c0_i32_1 = arith.constant 0 : i32
    return %c0_i32, %c0_i32_0 : i32, i32
  }
  func.func @transform_7(%arg0: i32) -> (i32, i32) {
    %c0_i32 = arith.constant 0 : i32
    %c0_i32_0 = arith.constant 0 : i32
    return %arg0, %c0_i32 : i32, i32
  }
}

</mosaic_0001>

<llo_original>
// kernel: actor_forward.1
$region0: #{actor_forward.1}
  #allocation0 [shape = 'u32[]', space=smem, size = 0x4, offset = 0x4, fixed_abs, tag = 'smem constant byte address 0x4 - core index']
  #allocation1 [shape = 'u32[72,128]{1,0:T(1,128)}', space=vmem, size = 0x9000, scoped, tag = 'internal scratch']
  %s0 = inlined_call_operand.hbm [shape: f32[8,32], index: 0, kind: input, shape index: {}]
  %s1 = inlined_call_operand.hbm [shape: bf16[32,512], index: 1, kind: input, shape index: {}]
  %s2 = inlined_call_operand.hbm [shape: f32[1,512], index: 2, kind: input, shape index: {}]
  %s3 = inlined_call_operand.hbm [shape: bf16[512,384], index: 3, kind: input, shape index: {}]
  %s4 = inlined_call_operand.hbm [shape: f32[1,384], index: 4, kind: input, shape index: {}]
  %s5 = inlined_call_operand.hbm [shape: bf16[384,128], index: 5, kind: input, shape index: {}]
  %s6 = inlined_call_operand.vmem [shape: f32[1,128], index: 6, kind: input, shape index: {}]
  %s7 = inlined_call_operand.hbm [shape: bf16[8,128], index: 7, kind: output, shape index: {}]
  %s8 = sld [smem:[#allocation0]]
  $region62: #{actor_forward.1} parent=0
    _
  %s10 = ssub.s32 1, %s8
  %s11 = scalar_select 0, %s10, %s8
  $region1: #{actor_forward.1} parent=0
    #allocation2 [shape = 'u8[4096]{0}', space=vmem, size = 0x1000, scoped, tag = 'input window, operand 0, single buffered']
    #allocation3 [shape = 's32[1]{0}', space=sflag, size = 0x4, scoped, tag = 'scoped memory for actor_forward.1']
    #allocation4 [shape = 's32[1]{0}', space=sflag, size = 0x4, scoped, tag = 'scoped memory for actor_forward.1']
    #allocation5 [shape = 'u8[32768]{0}', space=vmem, size = 0x8000, scoped, tag = 'input window, operand 1, single buffered']
    #allocation6 [shape = 's32[1]{0}', space=sflag, size = 0x4, scoped, tag = 'scoped memory for actor_forward.1']
    #allocation7 [shape = 'u8[2048]{0}', space=vmem, size = 0x800, scoped, tag = 'input window, operand 2, single buffered']
    #allocation8 [shape = 'u8[393216]{0}', space=vmem, size = 0x60000, scoped, tag = 'input window, operand 3, single buffered']
    #allocation9 [shape = 's32[1]{0}', space=sflag, size = 0x4, scoped, tag = 'scoped memory for actor_forward.1']
    #allocation10 [shape = 'u8[1536]{0}', space=vmem, size = 0x800, scoped, tag = 'input window, operand 4, single buffered']
    #allocation11 [shape = 'u8[98304]{0}', space=vmem, size = 0x18000, scoped, tag = 'input window, operand 5, single buffered']
    #allocation12 [shape = 's32[1]{0}', space=sflag, size = 0x4, scoped, tag = 'scoped memory for actor_forward.1']
    #allocation13 [shape = 'u8[2048]{0}', space=vmem, size = 0x800, scoped, tag = 'output window, operand 0, single buffered']
    %12 = vsyncpa [#allocation3], 0
    %13 = vsyncpa [#allocation6], 0
    %14 = vsyncpa [#allocation9], 0
    %15 = vsyncpa [#allocation12], 0
    %16 = vsyncpa [#allocation4], 0
    // Predicated region
    $region2: #{actor_forward.1} parent=1 // pred_check
      _
    $region3: #{actor_forward.1} parent=1 // pred_check_branch
      %18 = sbr.rel (0) target = $region5
    $region4: #{actor_forward.1} parent=1 // pred_region
      %20 = vsyncadd [#allocation3], 0
      %s22 = sshll.u32 %s0, 4
      %s23 = int_to_ptr.hbm [resolvable:$true] %s22
      %s24 = sshll.u32 [#allocation2], 4
      %s25 = int_to_ptr.vmem [resolvable:$true] %s24
      %27 = dma.hbm_to_vmem [thread:$0]  %s23, 128, %s25, [#allocation3]
    $region5: #{actor_forward.1} parent=1 // pred_fallthru
      _
    // Predicated region
    $region6: #{actor_forward.1} parent=1 // pred_check
      _
    $region7: #{actor_forward.1} parent=1 // pred_check_branch
      %29 = sbr.rel (0) target = $region9
    $region8: #{actor_forward.1} parent=1 // pred_region
      %31 = vsyncadd [#allocation6], 0
      %s32 = sshll.u32 %s1, 4
      %s33 = int_to_ptr.hbm [resolvable:$true] %s32
      %s34 = sshll.u32 [#allocation5], 4
      %s35 = int_to_ptr.vmem [resolvable:$true] %s34
      %40 = dma.hbm_to_vmem [thread:$0]  %s33, 1024, %s35, [#allocation6], 256, 256, 16
    $region9: #{actor_forward.1} parent=1 // pred_fallthru
      _
    // Predicated region
    $region10: #{actor_forward.1} parent=1 // pred_check
      _
    $region11: #{actor_forward.1} parent=1 // pred_check_branch
      %42 = sbr.rel (0) target = $region13
    $region12: #{actor_forward.1} parent=1 // pred_region
      %44 = vsyncadd [#allocation6], 0
      %s46 = sshll.u32 %s2, 4
      %s47 = int_to_ptr.hbm [resolvable:$true] %s46
      %s48 = sshll.u32 [#allocation7], 4
      %s49 = int_to_ptr.vmem [resolvable:$true] %s48
      %51 = dma.hbm_to_vmem [thread:$0]  %s47, 64, %s49, [#allocation6]
    $region13: #{actor_forward.1} parent=1 // pred_fallthru
      _
    // Predicated region
    $region14: #{actor_forward.1} parent=1 // pred_check
      _
    $region15: #{actor_forward.1} parent=1 // pred_check_branch
      %53 = sbr.rel (0) target = $region17
    $region16: #{actor_forward.1} parent=1 // pred_region
      %55 = vsyncadd [#allocation9], 0
      %s56 = sshll.u32 %s3, 4
      %s57 = int_to_ptr.hbm [resolvable:$true] %s56
      %s58 = sshll.u32 [#allocation8], 4
      %s59 = int_to_ptr.vmem [resolvable:$true] %s58
      %64 = dma.hbm_to_vmem [thread:$0]  %s57, 12288, %s59, [#allocation9], 192, 192, 12
    $region17: #{actor_forward.1} parent=1 // pred_fallthru
      _
    // Predicated region
    $region18: #{actor_forward.1} parent=1 // pred_check
      _
    $region19: #{actor_forward.1} parent=1 // pred_check_branch
      %66 = sbr.rel (0) target = $region21
    $region20: #{actor_forward.1} parent=1 // pred_region
      %68 = vsyncadd [#allocation9], 0
      %s70 = sshll.u32 %s4, 4
      %s71 = int_to_ptr.hbm [resolvable:$true] %s70
      %s72 = sshll.u32 [#allocation10], 4
      %s73 = int_to_ptr.vmem [resolvable:$true] %s72
      %75 = dma.hbm_to_vmem [thread:$0]  %s71, 48, %s73, [#allocation9]
    $region21: #{actor_forward.1} parent=1 // pred_fallthru
      _
    // Predicated region
    $region22: #{actor_forward.1} parent=1 // pred_check
      _
    $region23: #{actor_forward.1} parent=1 // pred_check_branch
      %77 = sbr.rel (0) target = $region25
    $region24: #{actor_forward.1} parent=1 // pred_region
      %79 = vsyncadd [#allocation12], 0
      %s80 = sshll.u32 %s5, 4
      %s81 = int_to_ptr.hbm [resolvable:$true] %s80
      %s82 = sshll.u32 [#allocation11], 4
      %s83 = int_to_ptr.vmem [resolvable:$true] %s82
      %88 = dma.hbm_to_vmem [thread:$0]  %s81, 3072, %s83, [#allocation12], 64, 64, 4
    $region25: #{actor_forward.1} parent=1 // pred_fallthru
      _
    // Predicated region
    $region26: #{actor_forward.1} parent=1 // pred_check
      _
    $region27: #{actor_forward.1} parent=1 // pred_check_branch
      %90 = sbr.rel (0) target = $region29
    $region28: #{actor_forward.1} parent=1 // pred_region
      _
    $region29: #{actor_forward.1} parent=1 // pred_fallthru
      _
    // Predicated region
    $region30: #{actor_forward.1} parent=1 // pred_check
      _
    $region31: #{actor_forward.1} parent=1 // pred_check_branch
      %92 = sbr.rel (0) target = $region33
    $region32: #{actor_forward.1} parent=1 // pred_region
      %94 = dma.done [#allocation3], 128
    $region33: #{actor_forward.1} parent=1 // pred_fallthru
      _
    // Predicated region
    $region34: #{actor_forward.1} parent=1 // pred_check
      _
    $region35: #{actor_forward.1} parent=1 // pred_check_branch
      %96 = sbr.rel (0) target = $region37
    $region36: #{actor_forward.1} parent=1 // pred_region
      %98 = dma.done [#allocation6], 1024
    $region37: #{actor_forward.1} parent=1 // pred_fallthru
      _
    // Predicated region
    $region38: #{actor_forward.1} parent=1 // pred_check
      _
    $region39: #{actor_forward.1} parent=1 // pred_check_branch
      %100 = sbr.rel (0) target = $region41
    $region40: #{actor_forward.1} parent=1 // pred_region
      %102 = dma.done [#allocation6], 64
    $region41: #{actor_forward.1} parent=1 // pred_fallthru
      _
    // Predicated region
    $region42: #{actor_forward.1} parent=1 // pred_check
      _
    $region43: #{actor_forward.1} parent=1 // pred_check_branch
      %104 = sbr.rel (0) target = $region45
    $region44: #{actor_forward.1} parent=1 // pred_region
      %106 = dma.done [#allocation9], 12288
    $region45: #{actor_forward.1} parent=1 // pred_fallthru
      _
    // Predicated region
    $region46: #{actor_forward.1} parent=1 // pred_check
      _
    $region47: #{actor_forward.1} parent=1 // pred_check_branch
      %108 = sbr.rel (0) target = $region49
    $region48: #{actor_forward.1} parent=1 // pred_region
      %110 = dma.done [#allocation9], 48
    $region49: #{actor_forward.1} parent=1 // pred_fallthru
      _
    // Predicated region
    $region50: #{actor_forward.1} parent=1 // pred_check
      _
    $region51: #{actor_forward.1} parent=1 // pred_check_branch
      %112 = sbr.rel (0) target = $region53
    $region52: #{actor_forward.1} parent=1 // pred_region
      %114 = dma.done [#allocation12], 3072
    $region53: #{actor_forward.1} parent=1 // pred_fallthru
      _
    %v116 = vld [vmem:[#allocation2] sm:$0xff]
    %v117 = vpack.c.bf16 %v116, %v116
    %v118 = vld [vmem:[#allocation5] sm:$0xff]
    %v119 = vld [vmem:[#allocation5 + $0x8] sm:$0xff]
    %v120 = vld [vmem:[#allocation5 + $0x10] sm:$0xff]
    %v121 = vld [vmem:[#allocation5 + $0x18] sm:$0xff]
    %v122 = vld [vmem:[#allocation5 + $0x20] sm:$0xff]
    %v123 = vld [vmem:[#allocation5 + $0x28] sm:$0xff]
    %v124 = vld [vmem:[#allocation5 + $0x30] sm:$0xff]
    %v125 = vld [vmem:[#allocation5 + $0x38] sm:$0xff]
    %v126 = vld [vmem:[#allocation7] sm:$0xf]
    %v128 = vperm.slane %v126, 0
    %v129 = vperm.slane %v126, 1
    %v130 = vperm.slane %v126, 2
    %v131 = vperm.slane %v126, 3
    %v144 = vunpack.c.l.b16 %v118
    %v145 = vunpack.c.h.b16 %v118
    %v146 = vunpack.c.l.b16 %v119
    %v147 = vunpack.c.h.b16 %v119
    %v148 = vunpack.c.l.b16 %v120
    %v149 = vunpack.c.h.b16 %v120
    %v150 = vunpack.c.l.b16 %v121
    %v151 = vunpack.c.h.b16 %v121
    %v152 = vunpack.c.l.b16 %v122
    %v153 = vunpack.c.h.b16 %v122
    %v154 = vunpack.c.l.b16 %v123
    %v155 = vunpack.c.h.b16 %v123
    %v156 = vunpack.c.l.b16 %v124
    %v157 = vunpack.c.h.b16 %v124
    %v158 = vunpack.c.l.b16 %v125
    %v159 = vunpack.c.h.b16 %v125
    %v160 = vpack.c.b16 %v148, %v144
    %v161 = vpack.c.b16 %v149, %v145
    %v162 = vpack.c.b16 %v150, %v146
    %v163 = vpack.c.b16 %v151, %v147
    %v164 = vpack.c.b16 %v156, %v152
    %v165 = vpack.c.b16 %v157, %v153
    %v166 = vpack.c.b16 %v158, %v154
    %v167 = vpack.c.b16 %v159, %v155
    %vm176 = vcmask 261120
    %v178 = vsel %vm176, %v117, 0
    %180 = vmatpush.bf16.msra.mxu0 0
    %181 = vmatpush.bf16.msra.mxu0 0
    %182 = vmatpush.bf16.msra.mxu0 0
    %183 = vmatpush.bf16.msra.mxu0 0
    %184 = vmatpush.bf16.msra.mxu0 0
    %185 = vmatpush.bf16.msra.mxu0 0
    %186 = vmatpush.bf16.msra.mxu0 %v164
    %187 = vmatpush.bf16.msra.mxu0 %v160
    %188 = vmatmul.bf16.gmra.mxu0 %v178
    %v189 = vpop.f32.mrf.mxu0
    %v190 = vadd.f32 %v128, %v189
    %v191 = vpop.f32.mrf.mxu0
    %192 = vdwg.mxu0
    %193 = vmatpush.bf16.msra.mxu0 0
    %194 = vmatpush.bf16.msra.mxu0 0
    %195 = vmatpush.bf16.msra.mxu0 0
    %196 = vmatpush.bf16.msra.mxu0 0
    %197 = vmatpush.bf16.msra.mxu0 0
    %198 = vmatpush.bf16.msra.mxu0 0
    %199 = vmatpush.bf16.msra.mxu0 %v165
    %200 = vmatpush.bf16.msra.mxu0 %v161
    %201 = vmatmul.bf16.gmra.mxu0 %v178
    %v202 = vpop.f32.mrf.mxu0
    %v203 = vadd.f32 %v129, %v202
    %v204 = vpop.f32.mrf.mxu0
    %205 = vdwg.mxu0
    %206 = vmatpush.bf16.msra.mxu0 0
    %207 = vmatpush.bf16.msra.mxu0 0
    %208 = vmatpush.bf16.msra.mxu0 0
    %209 = vmatpush.bf16.msra.mxu0 0
    %210 = vmatpush.bf16.msra.mxu0 0
    %211 = vmatpush.bf16.msra.mxu0 0
    %212 = vmatpush.bf16.msra.mxu0 %v166
    %213 = vmatpush.bf16.msra.mxu0 %v162
    %214 = vmatmul.bf16.gmra.mxu0 %v178
    %v215 = vpop.f32.mrf.mxu0
    %v216 = vadd.f32 %v130, %v215
    %v217 = vpop.f32.mrf.mxu0
    %218 = vdwg.mxu0
    %219 = vmatpush.bf16.msra.mxu0 0
    %220 = vmatpush.bf16.msra.mxu0 0
    %221 = vmatpush.bf16.msra.mxu0 0
    %222 = vmatpush.bf16.msra.mxu0 0
    %223 = vmatpush.bf16.msra.mxu0 0
    %224 = vmatpush.bf16.msra.mxu0 0
    %225 = vmatpush.bf16.msra.mxu0 %v167
    %226 = vmatpush.bf16.msra.mxu0 %v163
    %227 = vmatmul.bf16.gmra.mxu0 %v178
    %v228 = vpop.f32.mrf.mxu0
    %v229 = vadd.f32 %v131, %v228
    %v230 = vpop.f32.mrf.mxu0
    %231 = vdwg.mxu0
    %v232 = vmax.f32 %v190, 0.0
    %v233 = vmax.f32 %v203, 0.0
    %v234 = vmax.f32 %v216, 0.0
    %v235 = vmax.f32 %v229, 0.0
    %v236 = vpack.c.bf16 %v232, %v232
    %v237 = vpack.c.bf16 %v233, %v233
    %v238 = vpack.c.bf16 %v234, %v234
    %v239 = vpack.c.bf16 %v235, %v235
    %v240 = vld [vmem:[#allocation8] sm:$0xff]
    %v241 = vld [vmem:[#allocation8 + $0x8] sm:$0xf]
    %v242 = vld [vmem:[#allocation8 + $0xc] sm:$0xff]
    %v243 = vld [vmem:[#allocation8 + $0x14] sm:$0xf]
    %v244 = vld [vmem:[#allocation8 + $0x18] sm:$0xff]
    %v245 = vld [vmem:[#allocation8 + $0x20] sm:$0xf]
    %v246 = vld [vmem:[#allocation8 + $0x24] sm:$0xff]
    %v247 = vld [vmem:[#allocation8 + $0x2c] sm:$0xf]
    %v248 = vld [vmem:[#allocation8 + $0x30] sm:$0xff]
    %v249 = vld [vmem:[#allocation8 + $0x38] sm:$0xf]
    %v250 = vld [vmem:[#allocation8 + $0x3c] sm:$0xff]
    %v251 = vld [vmem:[#allocation8 + $0x44] sm:$0xf]
    %v252 = vld [vmem:[#allocation8 + $0x48] sm:$0xff]
    %v253 = vld [vmem:[#allocation8 + $0x50] sm:$0xf]
    %v254 = vld [vmem:[#allocation8 + $0x54] sm:$0xff]
    %v255 = vld [vmem:[#allocation8 + $0x5c] sm:$0xf]
    %v256 = vld [vmem:[#allocation8 + $0x60] sm:$0xff]
    %v257 = vld [vmem:[#allocation8 + $0x68] sm:$0xf]
    %v258 = vld [vmem:[#allocation8 + $0x6c] sm:$0xff]
    %v259 = vld [vmem:[#allocation8 + $0x74] sm:$0xf]
    %v260 = vld [vmem:[#allocation8 + $0x78] sm:$0xff]
    %v261 = vld [vmem:[#allocation8 + $0x80] sm:$0xf]
    %v262 = vld [vmem:[#allocation8 + $0x84] sm:$0xff]
    %v263 = vld [vmem:[#allocation8 + $0x8c] sm:$0xf]
    %v264 = vld [vmem:[#allocation8 + $0x90] sm:$0xff]
    %v265 = vld [vmem:[#allocation8 + $0x98] sm:$0xf]
    %v266 = vld [vmem:[#allocation8 + $0x9c] sm:$0xff]
    %v267 = vld [vmem:[#allocation8 + $0xa4] sm:$0xf]
    %v268 = vld [vmem:[#allocation8 + $0xa8] sm:$0xff]
    %v269 = vld [vmem:[#allocation8 + $0xb0] sm:$0xf]
    %v270 = vld [vmem:[#allocation8 + $0xb4] sm:$0xff]
    %v271 = vld [vmem:[#allocation8 + $0xbc] sm:$0xf]
    %v272 = vld [vmem:[#allocation8 + $0xc0] sm:$0xff]
    %v273 = vld [vmem:[#allocation8 + $0xc8] sm:$0xf]
    %v274 = vld [vmem:[#allocation8 + $0xcc] sm:$0xff]
    %v275 = vld [vmem:[#allocation8 + $0xd4] sm:$0xf]
    %v276 = vld [vmem:[#allocation8 + $0xd8] sm:$0xff]
    %v277 = vld [vmem:[#allocation8 + $0xe0] sm:$0xf]
    %v278 = vld [vmem:[#allocation8 + $0xe4] sm:$0xff]
    %v279 = vld [vmem:[#allocation8 + $0xec] sm:$0xf]
    %v280 = vld [vmem:[#allocation8 + $0xf0] sm:$0xff]
    %v281 = vld [vmem:[#allocation8 + $0xf8] sm:$0xf]
    %v282 = vld [vmem:[#allocation8 + $0xfc] sm:$0xff]
    %v283 = vld [vmem:[#allocation8 + $0x104] sm:$0xf]
    %v284 = vld [vmem:[#allocation8 + $0x108] sm:$0xff]
    %v285 = vld [vmem:[#allocation8 + $0x110] sm:$0xf]
    %v286 = vld [vmem:[#allocation8 + $0x114] sm:$0xff]
    %v287 = vld [vmem:[#allocation8 + $0x11c] sm:$0xf]
    %v288 = vld [vmem:[#allocation8 + $0x120] sm:$0xff]
    %v289 = vld [vmem:[#allocation8 + $0x128] sm:$0xf]
    %v290 = vld [vmem:[#allocation8 + $0x12c] sm:$0xff]
    %v291 = vld [vmem:[#allocation8 + $0x134] sm:$0xf]
    %v292 = vld [vmem:[#allocation8 + $0x138] sm:$0xff]
    %v293 = vld [vmem:[#allocation8 + $0x140] sm:$0xf]
    %v294 = vld [vmem:[#allocation8 + $0x144] sm:$0xff]
    %v295 = vld [vmem:[#allocation8 + $0x14c] sm:$0xf]
    %v296 = vld [vmem:[#allocation8 + $0x150] sm:$0xff]
    %v297 = vld [vmem:[#allocation8 + $0x158] sm:$0xf]
    %v298 = vld [vmem:[#allocation8 + $0x15c] sm:$0xff]
    %v299 = vld [vmem:[#allocation8 + $0x164] sm:$0xf]
    %v300 = vld [vmem:[#allocation8 + $0x168] sm:$0xff]
    %v301 = vld [vmem:[#allocation8 + $0x170] sm:$0xf]
    %v302 = vld [vmem:[#allocation8 + $0x174] sm:$0xff]
    %v303 = vld [vmem:[#allocation8 + $0x17c] sm:$0xf]
    %v304 = vld [vmem:[#allocation8 + $0x180] sm:$0xff]
    %v305 = vld [vmem:[#allocation8 + $0x188] sm:$0xf]
    %v306 = vld [vmem:[#allocation8 + $0x18c] sm:$0xff]
    %v307 = vld [vmem:[#allocation8 + $0x194] sm:$0xf]
    %v308 = vld [vmem:[#allocation8 + $0x198] sm:$0xff]
    %v309 = vld [vmem:[#allocation8 + $0x1a0] sm:$0xf]
    %v310 = vld [vmem:[#allocation8 + $0x1a4] sm:$0xff]
    %v311 = vld [vmem:[#allocation8 + $0x1ac] sm:$0xf]
    %v312 = vld [vmem:[#allocation8 + $0x1b0] sm:$0xff]
    %v313 = vld [vmem:[#allocation8 + $0x1b8] sm:$0xf]
    %v314 = vld [vmem:[#allocation8 + $0x1bc] sm:$0xff]
    %v315 = vld [vmem:[#allocation8 + $0x1c4] sm:$0xf]
    %v316 = vld [vmem:[#allocation8 + $0x1c8] sm:$0xff]
    %v317 = vld [vmem:[#allocation8 + $0x1d0] sm:$0xf]
    %v318 = vld [vmem:[#allocation8 + $0x1d4] sm:$0xff]
    %v319 = vld [vmem:[#allocation8 + $0x1dc] sm:$0xf]
    %v320 = vld [vmem:[#allocation8 + $0x1e0] sm:$0xff]
    %v321 = vld [vmem:[#allocation8 + $0x1e8] sm:$0xf]
    %v322 = vld [vmem:[#allocation8 + $0x1ec] sm:$0xff]
    %v323 = vld [vmem:[#allocation8 + $0x1f4] sm:$0xf]
    %v324 = vld [vmem:[#allocation8 + $0x1f8] sm:$0xff]
    %v325 = vld [vmem:[#allocation8 + $0x200] sm:$0xf]
    %v326 = vld [vmem:[#allocation8 + $0x204] sm:$0xff]
    %v327 = vld [vmem:[#allocation8 + $0x20c] sm:$0xf]
    %v328 = vld [vmem:[#allocation8 + $0x210] sm:$0xff]
    %v329 = vld [vmem:[#allocation8 + $0x218] sm:$0xf]
    %v330 = vld [vmem:[#allocation8 + $0x21c] sm:$0xff]
    %v331 = vld [vmem:[#allocation8 + $0x224] sm:$0xf]
    %v332 = vld [vmem:[#allocation8 + $0x228] sm:$0xff]
    %v333 = vld [vmem:[#allocation8 + $0x230] sm:$0xf]
    %v334 = vld [vmem:[#allocation8 + $0x234] sm:$0xff]
    %v335 = vld [vmem:[#allocation8 + $0x23c] sm:$0xf]
    %v336 = vld [vmem:[#allocation8 + $0x240] sm:$0xff]
    %v337 = vld [vmem:[#allocation8 + $0x248] sm:$0xf]
    %v338 = vld [vmem:[#allocation8 + $0x24c] sm:$0xff]
    %v339 = vld [vmem:[#allocation8 + $0x254] sm:$0xf]
    %v340 = vld [vmem:[#allocation8 + $0x258] sm:$0xff]
    %v341 = vld [vmem:[#allocation8 + $0x260] sm:$0xf]
    %v342 = vld [vmem:[#allocation8 + $0x264] sm:$0xff]
    %v343 = vld [vmem:[#allocation8 + $0x26c] sm:$0xf]
    %v344 = vld [vmem:[#allocation8 + $0x270] sm:$0xff]
    %v345 = vld [vmem:[#allocation8 + $0x278] sm:$0xf]
    %v346 = vld [vmem:[#allocation8 + $0x27c] sm:$0xff]
    %v347 = vld [vmem:[#allocation8 + $0x284] sm:$0xf]
    %v348 = vld [vmem:[#allocation8 + $0x288] sm:$0xff]
    %v349 = vld [vmem:[#allocation8 + $0x290] sm:$0xf]
    %v350 = vld [vmem:[#allocation8 + $0x294] sm:$0xff]
    %v351 = vld [vmem:[#allocation8 + $0x29c] sm:$0xf]
    %v352 = vld [vmem:[#allocation8 + $0x2a0] sm:$0xff]
    %v353 = vld [vmem:[#allocation8 + $0x2a8] sm:$0xf]
    %v354 = vld [vmem:[#allocation8 + $0x2ac] sm:$0xff]
    %v355 = vld [vmem:[#allocation8 + $0x2b4] sm:$0xf]
    %v356 = vld [vmem:[#allocation8 + $0x2b8] sm:$0xff]
    %v357 = vld [vmem:[#allocation8 + $0x2c0] sm:$0xf]
    %v358 = vld [vmem:[#allocation8 + $0x2c4] sm:$0xff]
    %v359 = vld [vmem:[#allocation8 + $0x2cc] sm:$0xf]
    %v360 = vld [vmem:[#allocation8 + $0x2d0] sm:$0xff]
    %v361 = vld [vmem:[#allocation8 + $0x2d8] sm:$0xf]
    %v362 = vld [vmem:[#allocation8 + $0x2dc] sm:$0xff]
    %v363 = vld [vmem:[#allocation8 + $0x2e4] sm:$0xf]
    %v364 = vld [vmem:[#allocation8 + $0x2e8] sm:$0xff]
    %v365 = vld [vmem:[#allocation8 + $0x2f0] sm:$0xf]
    %v366 = vld [vmem:[#allocation8 + $0x2f4] sm:$0xff]
    %v367 = vld [vmem:[#allocation8 + $0x2fc] sm:$0xf]
    %v368 = vld [vmem:[#allocation10] sm:$0x7]
    %v370 = vperm.slane %v368, 0
    %v371 = vperm.slane %v368, 1
    %v372 = vperm.slane %v368, 2
    %v504 = vunpack.c.l.b16 %v240
    %v505 = vunpack.c.h.b16 %v240
    %v506 = vunpack.c.l.b16 %v241
    %v507 = vunpack.c.l.b16 %v242
    %v508 = vunpack.c.h.b16 %v242
    %v509 = vunpack.c.l.b16 %v243
    %v510 = vunpack.c.l.b16 %v244
    %v511 = vunpack.c.h.b16 %v244
    %v512 = vunpack.c.l.b16 %v245
    %v513 = vunpack.c.l.b16 %v246
    %v514 = vunpack.c.h.b16 %v246
    %v515 = vunpack.c.l.b16 %v247
    %v516 = vunpack.c.l.b16 %v248
    %v517 = vunpack.c.h.b16 %v248
    %v518 = vunpack.c.l.b16 %v249
    %v519 = vunpack.c.l.b16 %v250
    %v520 = vunpack.c.h.b16 %v250
    %v521 = vunpack.c.l.b16 %v251
    %v522 = vunpack.c.l.b16 %v252
    %v523 = vunpack.c.h.b16 %v252
    %v524 = vunpack.c.l.b16 %v253
    %v525 = vunpack.c.l.b16 %v254
    %v526 = vunpack.c.h.b16 %v254
    %v527 = vunpack.c.l.b16 %v255
    %v528 = vunpack.c.l.b16 %v256
    %v529 = vunpack.c.h.b16 %v256
    %v530 = vunpack.c.l.b16 %v257
    %v531 = vunpack.c.l.b16 %v258
    %v532 = vunpack.c.h.b16 %v258
    %v533 = vunpack.c.l.b16 %v259
    %v534 = vunpack.c.l.b16 %v260
    %v535 = vunpack.c.h.b16 %v260
    %v536 = vunpack.c.l.b16 %v261
    %v537 = vunpack.c.l.b16 %v262
    %v538 = vunpack.c.h.b16 %v262
    %v539 = vunpack.c.l.b16 %v263
    %v540 = vunpack.c.l.b16 %v264
    %v541 = vunpack.c.h.b16 %v264
    %v542 = vunpack.c.l.b16 %v265
    %v543 = vunpack.c.l.b16 %v266
    %v544 = vunpack.c.h.b16 %v266
    %v545 = vunpack.c.l.b16 %v267
    %v546 = vunpack.c.l.b16 %v268
    %v547 = vunpack.c.h.b16 %v268
    %v548 = vunpack.c.l.b16 %v269
    %v549 = vunpack.c.l.b16 %v270
    %v550 = vunpack.c.h.b16 %v270
    %v551 = vunpack.c.l.b16 %v271
    %v552 = vunpack.c.l.b16 %v272
    %v553 = vunpack.c.h.b16 %v272
    %v554 = vunpack.c.l.b16 %v273
    %v555 = vunpack.c.l.b16 %v274
    %v556 = vunpack.c.h.b16 %v274
    %v557 = vunpack.c.l.b16 %v275
    %v558 = vunpack.c.l.b16 %v276
    %v559 = vunpack.c.h.b16 %v276
    %v560 = vunpack.c.l.b16 %v277
    %v561 = vunpack.c.l.b16 %v278
    %v562 = vunpack.c.h.b16 %v278
    %v563 = vunpack.c.l.b16 %v279
    %v564 = vunpack.c.l.b16 %v280
    %v565 = vunpack.c.h.b16 %v280
    %v566 = vunpack.c.l.b16 %v281
    %v567 = vunpack.c.l.b16 %v282
    %v568 = vunpack.c.h.b16 %v282
    %v569 = vunpack.c.l.b16 %v283
    %v570 = vunpack.c.l.b16 %v284
    %v571 = vunpack.c.h.b16 %v284
    %v572 = vunpack.c.l.b16 %v285
    %v573 = vunpack.c.l.b16 %v286
    %v574 = vunpack.c.h.b16 %v286
    %v575 = vunpack.c.l.b16 %v287
    %v576 = vunpack.c.l.b16 %v288
    %v577 = vunpack.c.h.b16 %v288
    %v578 = vunpack.c.l.b16 %v289
    %v579 = vunpack.c.l.b16 %v290
    %v580 = vunpack.c.h.b16 %v290
    %v581 = vunpack.c.l.b16 %v291
    %v582 = vunpack.c.l.b16 %v292
    %v583 = vunpack.c.h.b16 %v292
    %v584 = vunpack.c.l.b16 %v293
    %v585 = vunpack.c.l.b16 %v294
    %v586 = vunpack.c.h.b16 %v294
    %v587 = vunpack.c.l.b16 %v295
    %v588 = vunpack.c.l.b16 %v296
    %v589 = vunpack.c.h.b16 %v296
    %v590 = vunpack.c.l.b16 %v297
    %v591 = vunpack.c.l.b16 %v298
    %v592 = vunpack.c.h.b16 %v298
    %v593 = vunpack.c.l.b16 %v299
    %v594 = vunpack.c.l.b16 %v300
    %v595 = vunpack.c.h.b16 %v300
    %v596 = vunpack.c.l.b16 %v301
    %v597 = vunpack.c.l.b16 %v302
    %v598 = vunpack.c.h.b16 %v302
    %v599 = vunpack.c.l.b16 %v303
    %v600 = vunpack.c.l.b16 %v304
    %v601 = vunpack.c.h.b16 %v304
    %v602 = vunpack.c.l.b16 %v305
    %v603 = vunpack.c.l.b16 %v306
    %v604 = vunpack.c.h.b16 %v306
    %v605 = vunpack.c.l.b16 %v307
    %v606 = vunpack.c.l.b16 %v308
    %v607 = vunpack.c.h.b16 %v308
    %v608 = vunpack.c.l.b16 %v309
    %v609 = vunpack.c.l.b16 %v310
    %v610 = vunpack.c.h.b16 %v310
    %v611 = vunpack.c.l.b16 %v311
    %v612 = vunpack.c.l.b16 %v312
    %v613 = vunpack.c.h.b16 %v312
    %v614 = vunpack.c.l.b16 %v313
    %v615 = vunpack.c.l.b16 %v314
    %v616 = vunpack.c.h.b16 %v314
    %v617 = vunpack.c.l.b16 %v315
    %v618 = vunpack.c.l.b16 %v316
    %v619 = vunpack.c.h.b16 %v316
    %v620 = vunpack.c.l.b16 %v317
    %v621 = vunpack.c.l.b16 %v318
    %v622 = vunpack.c.h.b16 %v318
    %v623 = vunpack.c.l.b16 %v319
    %v624 = vunpack.c.l.b16 %v320
    %v625 = vunpack.c.h.b16 %v320
    %v626 = vunpack.c.l.b16 %v321
    %v627 = vunpack.c.l.b16 %v322
    %v628 = vunpack.c.h.b16 %v322
    %v629 = vunpack.c.l.b16 %v323
    %v630 = vunpack.c.l.b16 %v324
    %v631 = vunpack.c.h.b16 %v324
    %v632 = vunpack.c.l.b16 %v325
    %v633 = vunpack.c.l.b16 %v326
    %v634 = vunpack.c.h.b16 %v326
    %v635 = vunpack.c.l.b16 %v327
    %v636 = vunpack.c.l.b16 %v328
    %v637 = vunpack.c.h.b16 %v328
    %v638 = vunpack.c.l.b16 %v329
    %v639 = vunpack.c.l.b16 %v330
    %v640 = vunpack.c.h.b16 %v330
    %v641 = vunpack.c.l.b16 %v331
    %v642 = vunpack.c.l.b16 %v332
    %v643 = vunpack.c.h.b16 %v332
    %v644 = vunpack.c.l.b16 %v333
    %v645 = vunpack.c.l.b16 %v334
    %v646 = vunpack.c.h.b16 %v334
    %v647 = vunpack.c.l.b16 %v335
    %v648 = vunpack.c.l.b16 %v336
    %v649 = vunpack.c.h.b16 %v336
    %v650 = vunpack.c.l.b16 %v337
    %v651 = vunpack.c.l.b16 %v338
    %v652 = vunpack.c.h.b16 %v338
    %v653 = vunpack.c.l.b16 %v339
    %v654 = vunpack.c.l.b16 %v340
    %v655 = vunpack.c.h.b16 %v340
    %v656 = vunpack.c.l.b16 %v341
    %v657 = vunpack.c.l.b16 %v342
    %v658 = vunpack.c.h.b16 %v342
    %v659 = vunpack.c.l.b16 %v343
    %v660 = vunpack.c.l.b16 %v344
    %v661 = vunpack.c.h.b16 %v344
    %v662 = vunpack.c.l.b16 %v345
    %v663 = vunpack.c.l.b16 %v346
    %v664 = vunpack.c.h.b16 %v346
    %v665 = vunpack.c.l.b16 %v347
    %v666 = vunpack.c.l.b16 %v348
    %v667 = vunpack.c.h.b16 %v348
    %v668 = vunpack.c.l.b16 %v349
    %v669 = vunpack.c.l.b16 %v350
    %v670 = vunpack.c.h.b16 %v350
    %v671 = vunpack.c.l.b16 %v351
    %v672 = vunpack.c.l.b16 %v352
    %v673 = vunpack.c.h.b16 %v352
    %v674 = vunpack.c.l.b16 %v353
    %v675 = vunpack.c.l.b16 %v354
    %v676 = vunpack.c.h.b16 %v354
    %v677 = vunpack.c.l.b16 %v355
    %v678 = vunpack.c.l.b16 %v356
    %v679 = vunpack.c.h.b16 %v356
    %v680 = vunpack.c.l.b16 %v357
    %v681 = vunpack.c.l.b16 %v358
    %v682 = vunpack.c.h.b16 %v358
    %v683 = vunpack.c.l.b16 %v359
    %v684 = vunpack.c.l.b16 %v360
    %v685 = vunpack.c.h.b16 %v360
    %v686 = vunpack.c.l.b16 %v361
    %v687 = vunpack.c.l.b16 %v362
    %v688 = vunpack.c.h.b16 %v362
    %v689 = vunpack.c.l.b16 %v363
    %v690 = vunpack.c.l.b16 %v364
    %v691 = vunpack.c.h.b16 %v364
    %v692 = vunpack.c.l.b16 %v365
    %v693 = vunpack.c.l.b16 %v366
    %v694 = vunpack.c.h.b16 %v366
    %v695 = vunpack.c.l.b16 %v367
    %v696 = vpack.c.b16 %v507, %v504
    %v697 = vpack.c.b16 %v508, %v505
    %v698 = vpack.c.b16 %v509, %v506
    %v699 = vpack.c.b16 %v513, %v510
    %v700 = vpack.c.b16 %v514, %v511
    %v701 = vpack.c.b16 %v515, %v512
    %v702 = vpack.c.b16 %v519, %v516
    %v703 = vpack.c.b16 %v520, %v517
    %v704 = vpack.c.b16 %v521, %v518
    %v705 = vpack.c.b16 %v525, %v522
    %v706 = vpack.c.b16 %v526, %v523
    %v707 = vpack.c.b16 %v527, %v524
    %v708 = vpack.c.b16 %v531, %v528
    %v709 = vpack.c.b16 %v532, %v529
    %v710 = vpack.c.b16 %v533, %v530
    %v711 = vpack.c.b16 %v537, %v534
    %v712 = vpack.c.b16 %v538, %v535
    %v713 = vpack.c.b16 %v539, %v536
    %v714 = vpack.c.b16 %v543, %v540
    %v715 = vpack.c.b16 %v544, %v541
    %v716 = vpack.c.b16 %v545, %v542
    %v717 = vpack.c.b16 %v549, %v546
    %v718 = vpack.c.b16 %v550, %v547
    %v719 = vpack.c.b16 %v551, %v548
    %v720 = vpack.c.b16 %v555, %v552
    %v721 = vpack.c.b16 %v556, %v553
    %v722 = vpack.c.b16 %v557, %v554
    %v723 = vpack.c.b16 %v561, %v558
    %v724 = vpack.c.b16 %v562, %v559
    %v725 = vpack.c.b16 %v563, %v560
    %v726 = vpack.c.b16 %v567, %v564
    %v727 = vpack.c.b16 %v568, %v565
    %v728 = vpack.c.b16 %v569, %v566
    %v729 = vpack.c.b16 %v573, %v570
    %v730 = vpack.c.b16 %v574, %v571
    %v731 = vpack.c.b16 %v575, %v572
    %v732 = vpack.c.b16 %v579, %v576
    %v733 = vpack.c.b16 %v580, %v577
    %v734 = vpack.c.b16 %v581, %v578
    %v735 = vpack.c.b16 %v585, %v582
    %v736 = vpack.c.b16 %v586, %v583
    %v737 = vpack.c.b16 %v587, %v584
    %v738 = vpack.c.b16 %v591, %v588
    %v739 = vpack.c.b16 %v592, %v589
    %v740 = vpack.c.b16 %v593, %v590
    %v741 = vpack.c.b16 %v597, %v594
    %v742 = vpack.c.b16 %v598, %v595
    %v743 = vpack.c.b16 %v599, %v596
    %v744 = vpack.c.b16 %v603, %v600
    %v745 = vpack.c.b16 %v604, %v601
    %v746 = vpack.c.b16 %v605, %v602
    %v747 = vpack.c.b16 %v609, %v606
    %v748 = vpack.c.b16 %v610, %v607
    %v749 = vpack.c.b16 %v611, %v608
    %v750 = vpack.c.b16 %v615, %v612
    %v751 = vpack.c.b16 %v616, %v613
    %v752 = vpack.c.b16 %v617, %v614
    %v753 = vpack.c.b16 %v621, %v618
    %v754 = vpack.c.b16 %v622, %v619
    %v755 = vpack.c.b16 %v623, %v620
    %v756 = vpack.c.b16 %v627, %v624
    %v757 = vpack.c.b16 %v628, %v625
    %v758 = vpack.c.b16 %v629, %v626
    %v759 = vpack.c.b16 %v633, %v630
    %v760 = vpack.c.b16 %v634, %v631
    %v761 = vpack.c.b16 %v635, %v632
    %v762 = vpack.c.b16 %v639, %v636
    %v763 = vpack.c.b16 %v640, %v637
    %v764 = vpack.c.b16 %v641, %v638
    %v765 = vpack.c.b16 %v645, %v642
    %v766 = vpack.c.b16 %v646, %v643
    %v767 = vpack.c.b16 %v647, %v644
    %v768 = vpack.c.b16 %v651, %v648
    %v769 = vpack.c.b16 %v652, %v649
    %v770 = vpack.c.b16 %v653, %v650
    %v771 = vpack.c.b16 %v657, %v654
    %v772 = vpack.c.b16 %v658, %v655
    %v773 = vpack.c.b16 %v659, %v656
    %v774 = vpack.c.b16 %v663, %v660
    %v775 = vpack.c.b16 %v664, %v661
    %v776 = vpack.c.b16 %v665, %v662
    %v777 = vpack.c.b16 %v669, %v666
    %v778 = vpack.c.b16 %v670, %v667
    %v779 = vpack.c.b16 %v671, %v668
    %v780 = vpack.c.b16 %v675, %v672
    %v781 = vpack.c.b16 %v676, %v673
    %v782 = vpack.c.b16 %v677, %v674
    %v783 = vpack.c.b16 %v681, %v678
    %v784 = vpack.c.b16 %v682, %v679
    %v785 = vpack.c.b16 %v683, %v680
    %v786 = vpack.c.b16 %v687, %v684
    %v787 = vpack.c.b16 %v688, %v685
    %v788 = vpack.c.b16 %v689, %v686
    %v789 = vpack.c.b16 %v693, %v690
    %v790 = vpack.c.b16 %v694, %v691
    %v791 = vpack.c.b16 %v695, %v692
    %888 = vmatpush.bf16.msra.mxu0 %v717
    %889 = vmatpush.bf16.msra.mxu0 %v714
    %890 = vmatpush.bf16.msra.mxu0 %v711
    %891 = vmatpush.bf16.msra.mxu0 %v708
    %892 = vmatpush.bf16.msra.mxu0 %v705
    %893 = vmatpush.bf16.msra.mxu0 %v702
    %894 = vmatpush.bf16.msra.mxu0 %v699
    %895 = vmatpush.bf16.msra.mxu0 %v696
    %896 = vmatmul.bf16.gmra.mxu0 %v236
    %v897 = vpop.f32.mrf.mxu0
    %v898 = vadd.f32 %v370, %v897
    %v899 = vpop.f32.mrf.mxu0
    %900 = vdwg.mxu0
    %901 = vmatpush.bf16.msra.mxu0 %v741
    %902 = vmatpush.bf16.msra.mxu0 %v738
    %903 = vmatpush.bf16.msra.mxu0 %v735
    %904 = vmatpush.bf16.msra.mxu0 %v732
    %905 = vmatpush.bf16.msra.mxu0 %v729
    %906 = vmatpush.bf16.msra.mxu0 %v726
    %907 = vmatpush.bf16.msra.mxu0 %v723
    %908 = vmatpush.bf16.msra.mxu0 %v720
    %909 = vmatmul.bf16.gmra.mxu0 %v237
    %v910 = vpop.f32.mrf.mxu0
    %v911 = vadd.f32 %v898, %v910
    %v912 = vpop.f32.mrf.mxu0
    %913 = vdwg.mxu0
    %914 = vmatpush.bf16.msra.mxu0 %v765
    %915 = vmatpush.bf16.msra.mxu0 %v762
    %916 = vmatpush.bf16.msra.mxu0 %v759
    %917 = vmatpush.bf16.msra.mxu0 %v756
    %918 = vmatpush.bf16.msra.mxu0 %v753
    %919 = vmatpush.bf16.msra.mxu0 %v750
    %920 = vmatpush.bf16.msra.mxu0 %v747
    %921 = vmatpush.bf16.msra.mxu0 %v744
    %922 = vmatmul.bf16.gmra.mxu0 %v238
    %v923 = vpop.f32.mrf.mxu0
    %v924 = vadd.f32 %v911, %v923
    %v925 = vpop.f32.mrf.mxu0
    %926 = vdwg.mxu0
    %927 = vmatpush.bf16.msra.mxu0 %v789
    %928 = vmatpush.bf16.msra.mxu0 %v786
    %929 = vmatpush.bf16.msra.mxu0 %v783
    %930 = vmatpush.bf16.msra.mxu0 %v780
    %931 = vmatpush.bf16.msra.mxu0 %v777
    %932 = vmatpush.bf16.msra.mxu0 %v774
    %933 = vmatpush.bf16.msra.mxu0 %v771
    %934 = vmatpush.bf16.msra.mxu0 %v768
    %935 = vmatmul.bf16.gmra.mxu0 %v239
    %v936 = vpop.f32.mrf.mxu0
    %v937 = vadd.f32 %v924, %v936
    %v938 = vpop.f32.mrf.mxu0
    %939 = vdwg.mxu0
    %940 = vmatpush.bf16.msra.mxu0 %v718
    %941 = vmatpush.bf16.msra.mxu0 %v715
    %942 = vmatpush.bf16.msra.mxu0 %v712
    %943 = vmatpush.bf16.msra.mxu0 %v709
    %944 = vmatpush.bf16.msra.mxu0 %v706
    %945 = vmatpush.bf16.msra.mxu0 %v703
    %946 = vmatpush.bf16.msra.mxu0 %v700
    %947 = vmatpush.bf16.msra.mxu0 %v697
    %948 = vmatmul.bf16.gmra.mxu0 %v236
    %v949 = vpop.f32.mrf.mxu0
    %v950 = vadd.f32 %v371, %v949
    %v951 = vpop.f32.mrf.mxu0
    %952 = vdwg.mxu0
    %953 = vmatpush.bf16.msra.mxu0 %v742
    %954 = vmatpush.bf16.msra.mxu0 %v739
    %955 = vmatpush.bf16.msra.mxu0 %v736
    %956 = vmatpush.bf16.msra.mxu0 %v733
    %957 = vmatpush.bf16.msra.mxu0 %v730
    %958 = vmatpush.bf16.msra.mxu0 %v727
    %959 = vmatpush.bf16.msra.mxu0 %v724
    %960 = vmatpush.bf16.msra.mxu0 %v721
    %961 = vmatmul.bf16.gmra.mxu0 %v237
    %v962 = vpop.f32.mrf.mxu0
    %v963 = vadd.f32 %v950, %v962
    %v964 = vpop.f32.mrf.mxu0
    %965 = vdwg.mxu0
    %966 = vmatpush.bf16.msra.mxu0 %v766
    %967 = vmatpush.bf16.msra.mxu0 %v763
    %968 = vmatpush.bf16.msra.mxu0 %v760
    %969 = vmatpush.bf16.msra.mxu0 %v757
    %970 = vmatpush.bf16.msra.mxu0 %v754
    %971 = vmatpush.bf16.msra.mxu0 %v751
    %972 = vmatpush.bf16.msra.mxu0 %v748
    %973 = vmatpush.bf16.msra.mxu0 %v745
    %974 = vmatmul.bf16.gmra.mxu0 %v238
    %v975 = vpop.f32.mrf.mxu0
    %v976 = vadd.f32 %v963, %v975
    %v977 = vpop.f32.mrf.mxu0
    %978 = vdwg.mxu0
    %979 = vmatpush.bf16.msra.mxu0 %v790
    %980 = vmatpush.bf16.msra.mxu0 %v787
    %981 = vmatpush.bf16.msra.mxu0 %v784
    %982 = vmatpush.bf16.msra.mxu0 %v781
    %983 = vmatpush.bf16.msra.mxu0 %v778
    %984 = vmatpush.bf16.msra.mxu0 %v775
    %985 = vmatpush.bf16.msra.mxu0 %v772
    %986 = vmatpush.bf16.msra.mxu0 %v769
    %987 = vmatmul.bf16.gmra.mxu0 %v239
    %v988 = vpop.f32.mrf.mxu0
    %v989 = vadd.f32 %v976, %v988
    %v990 = vpop.f32.mrf.mxu0
    %991 = vdwg.mxu0
    %992 = vmatpush.bf16.msra.mxu0 %v719
    %993 = vmatpush.bf16.msra.mxu0 %v716
    %994 = vmatpush.bf16.msra.mxu0 %v713
    %995 = vmatpush.bf16.msra.mxu0 %v710
    %996 = vmatpush.bf16.msra.mxu0 %v707
    %997 = vmatpush.bf16.msra.mxu0 %v704
    %998 = vmatpush.bf16.msra.mxu0 %v701
    %999 = vmatpush.bf16.msra.mxu0 %v698
    %1000 = vmatmul.bf16.gmra.mxu0 %v236
    %v1001 = vpop.f32.mrf.mxu0
    %v1002 = vadd.f32 %v372, %v1001
    %v1003 = vpop.f32.mrf.mxu0
    %1004 = vdwg.mxu0
    %1005 = vmatpush.bf16.msra.mxu0 %v743
    %1006 = vmatpush.bf16.msra.mxu0 %v740
    %1007 = vmatpush.bf16.msra.mxu0 %v737
    %1008 = vmatpush.bf16.msra.mxu0 %v734
    %1009 = vmatpush.bf16.msra.mxu0 %v731
    %1010 = vmatpush.bf16.msra.mxu0 %v728
    %1011 = vmatpush.bf16.msra.mxu0 %v725
    %1012 = vmatpush.bf16.msra.mxu0 %v722
    %1013 = vmatmul.bf16.gmra.mxu0 %v237
    %v1014 = vpop.f32.mrf.mxu0
    %v1015 = vadd.f32 %v1002, %v1014
    %v1016 = vpop.f32.mrf.mxu0
    %1017 = vdwg.mxu0
    %1018 = vmatpush.bf16.msra.mxu0 %v767
    %1019 = vmatpush.bf16.msra.mxu0 %v764
    %1020 = vmatpush.bf16.msra.mxu0 %v761
    %1021 = vmatpush.bf16.msra.mxu0 %v758
    %1022 = vmatpush.bf16.msra.mxu0 %v755
    %1023 = vmatpush.bf16.msra.mxu0 %v752
    %1024 = vmatpush.bf16.msra.mxu0 %v749
    %1025 = vmatpush.bf16.msra.mxu0 %v746
    %1026 = vmatmul.bf16.gmra.mxu0 %v238
    %v1027 = vpop.f32.mrf.mxu0
    %v1028 = vadd.f32 %v1015, %v1027
    %v1029 = vpop.f32.mrf.mxu0
    %1030 = vdwg.mxu0
    %1031 = vmatpush.bf16.msra.mxu0 %v791
    %1032 = vmatpush.bf16.msra.mxu0 %v788
    %1033 = vmatpush.bf16.msra.mxu0 %v785
    %1034 = vmatpush.bf16.msra.mxu0 %v782
    %1035 = vmatpush.bf16.msra.mxu0 %v779
    %1036 = vmatpush.bf16.msra.mxu0 %v776
    %1037 = vmatpush.bf16.msra.mxu0 %v773
    %1038 = vmatpush.bf16.msra.mxu0 %v770
    %1039 = vmatmul.bf16.gmra.mxu0 %v239
    %v1040 = vpop.f32.mrf.mxu0
    %v1041 = vadd.f32 %v1028, %v1040
    %v1042 = vpop.f32.mrf.mxu0
    %1043 = vdwg.mxu0
    %v1044 = vmax.f32 %v937, 0.0
    %v1045 = vmax.f32 %v989, 0.0
    %v1046 = vmax.f32 %v1041, 0.0
    %v1047 = vpack.c.bf16 %v1044, %v1044
    %v1048 = vpack.c.bf16 %v1045, %v1045
    %v1049 = vpack.c.bf16 %v1046, %v1046
    %v1050 = vld [vmem:[#allocation11] sm:$0xf]
    %v1051 = vld [vmem:[#allocation11 + $0x4] sm:$0xf]
    %v1052 = vld [vmem:[#allocation11 + $0x8] sm:$0xf]
    %v1053 = vld [vmem:[#allocation11 + $0xc] sm:$0xf]
    %v1054 = vld [vmem:[#allocation11 + $0x10] sm:$0xf]
    %v1055 = vld [vmem:[#allocation11 + $0x14] sm:$0xf]
    %v1056 = vld [vmem:[#allocation11 + $0x18] sm:$0xf]
    %v1057 = vld [vmem:[#allocation11 + $0x1c] sm:$0xf]
    %v1058 = vld [vmem:[#allocation11 + $0x20] sm:$0xf]
    %v1059 = vld [vmem:[#allocation11 + $0x24] sm:$0xf]
    %v1060 = vld [vmem:[#allocation11 + $0x28] sm:$0xf]
    %v1061 = vld [vmem:[#allocation11 + $0x2c] sm:$0xf]
    %v1062 = vld [vmem:[#allocation11 + $0x30] sm:$0xf]
    %v1063 = vld [vmem:[#allocation11 + $0x34] sm:$0xf]
    %v1064 = vld [vmem:[#allocation11 + $0x38] sm:$0xf]
    %v1065 = vld [vmem:[#allocation11 + $0x3c] sm:$0xf]
    %v1066 = vld [vmem:[#allocation11 + $0x40] sm:$0xf]
    %v1067 = vld [vmem:[#allocation11 + $0x44] sm:$0xf]
    %v1068 = vld [vmem:[#allocation11 + $0x48] sm:$0xf]
    %v1069 = vld [vmem:[#allocation11 + $0x4c] sm:$0xf]
    %v1070 = vld [vmem:[#allocation11 + $0x50] sm:$0xf]
    %v1071 = vld [vmem:[#allocation11 + $0x54] sm:$0xf]
    %v1072 = vld [vmem:[#allocation11 + $0x58] sm:$0xf]
    %v1073 = vld [vmem:[#allocation11 + $0x5c] sm:$0xf]
    %v1074 = vld [vmem:[#allocation11 + $0x60] sm:$0xf]
    %v1075 = vld [vmem:[#allocation11 + $0x64] sm:$0xf]
    %v1076 = vld [vmem:[#allocation11 + $0x68] sm:$0xf]
    %v1077 = vld [vmem:[#allocation11 + $0x6c] sm:$0xf]
    %v1078 = vld [vmem:[#allocation11 + $0x70] sm:$0xf]
    %v1079 = vld [vmem:[#allocation11 + $0x74] sm:$0xf]
    %v1080 = vld [vmem:[#allocation11 + $0x78] sm:$0xf]
    %v1081 = vld [vmem:[#allocation11 + $0x7c] sm:$0xf]
    %v1082 = vld [vmem:[#allocation11 + $0x80] sm:$0xf]
    %v1083 = vld [vmem:[#allocation11 + $0x84] sm:$0xf]
    %v1084 = vld [vmem:[#allocation11 + $0x88] sm:$0xf]
    %v1085 = vld [vmem:[#allocation11 + $0x8c] sm:$0xf]
    %v1086 = vld [vmem:[#allocation11 + $0x90] sm:$0xf]
    %v1087 = vld [vmem:[#allocation11 + $0x94] sm:$0xf]
    %v1088 = vld [vmem:[#allocation11 + $0x98] sm:$0xf]
    %v1089 = vld [vmem:[#allocation11 + $0x9c] sm:$0xf]
    %v1090 = vld [vmem:[#allocation11 + $0xa0] sm:$0xf]
    %v1091 = vld [vmem:[#allocation11 + $0xa4] sm:$0xf]
    %v1092 = vld [vmem:[#allocation11 + $0xa8] sm:$0xf]
    %v1093 = vld [vmem:[#allocation11 + $0xac] sm:$0xf]
    %v1094 = vld [vmem:[#allocation11 + $0xb0] sm:$0xf]
    %v1095 = vld [vmem:[#allocation11 + $0xb4] sm:$0xf]
    %v1096 = vld [vmem:[#allocation11 + $0xb8] sm:$0xf]
    %v1097 = vld [vmem:[#allocation11 + $0xbc] sm:$0xf]
    %v1098 = vld [vmem:[%s6] sm:$0x1]
    %v1100 = vperm.slane %v1098, 0
    %v1150 = vunpack.c.l.b16 %v1050
    %v1151 = vunpack.c.l.b16 %v1051
    %v1152 = vunpack.c.l.b16 %v1052
    %v1153 = vunpack.c.l.b16 %v1053
    %v1154 = vunpack.c.l.b16 %v1054
    %v1155 = vunpack.c.l.b16 %v1055
    %v1156 = vunpack.c.l.b16 %v1056
    %v1157 = vunpack.c.l.b16 %v1057
    %v1158 = vunpack.c.l.b16 %v1058
    %v1159 = vunpack.c.l.b16 %v1059
    %v1160 = vunpack.c.l.b16 %v1060
    %v1161 = vunpack.c.l.b16 %v1061
    %v1162 = vunpack.c.l.b16 %v1062
    %v1163 = vunpack.c.l.b16 %v1063
    %v1164 = vunpack.c.l.b16 %v1064
    %v1165 = vunpack.c.l.b16 %v1065
    %v1166 = vunpack.c.l.b16 %v1066
    %v1167 = vunpack.c.l.b16 %v1067
    %v1168 = vunpack.c.l.b16 %v1068
    %v1169 = vunpack.c.l.b16 %v1069
    %v1170 = vunpack.c.l.b16 %v1070
    %v1171 = vunpack.c.l.b16 %v1071
    %v1172 = vunpack.c.l.b16 %v1072
    %v1173 = vunpack.c.l.b16 %v1073
    %v1174 = vunpack.c.l.b16 %v1074
    %v1175 = vunpack.c.l.b16 %v1075
    %v1176 = vunpack.c.l.b16 %v1076
    %v1177 = vunpack.c.l.b16 %v1077
    %v1178 = vunpack.c.l.b16 %v1078
    %v1179 = vunpack.c.l.b16 %v1079
    %v1180 = vunpack.c.l.b16 %v1080
    %v1181 = vunpack.c.l.b16 %v1081
    %v1182 = vunpack.c.l.b16 %v1082
    %v1183 = vunpack.c.l.b16 %v1083
    %v1184 = vunpack.c.l.b16 %v1084
    %v1185 = vunpack.c.l.b16 %v1085
    %v1186 = vunpack.c.l.b16 %v1086
    %v1187 = vunpack.c.l.b16 %v1087
    %v1188 = vunpack.c.l.b16 %v1088
    %v1189 = vunpack.c.l.b16 %v1089
    %v1190 = vunpack.c.l.b16 %v1090
    %v1191 = vunpack.c.l.b16 %v1091
    %v1192 = vunpack.c.l.b16 %v1092
    %v1193 = vunpack.c.l.b16 %v1093
    %v1194 = vunpack.c.l.b16 %v1094
    %v1195 = vunpack.c.l.b16 %v1095
    %v1196 = vunpack.c.l.b16 %v1096
    %v1197 = vunpack.c.l.b16 %v1097
    %v1198 = vpack.c.b16 %v1151, %v1150
    %v1199 = vpack.c.b16 %v1153, %v1152
    %v1200 = vpack.c.b16 %v1155, %v1154
    %v1201 = vpack.c.b16 %v1157, %v1156
    %v1202 = vpack.c.b16 %v1159, %v1158
    %v1203 = vpack.c.b16 %v1161, %v1160
    %v1204 = vpack.c.b16 %v1163, %v1162
    %v1205 = vpack.c.b16 %v1165, %v1164
    %v1206 = vpack.c.b16 %v1167, %v1166
    %v1207 = vpack.c.b16 %v1169, %v1168
    %v1208 = vpack.c.b16 %v1171, %v1170
    %v1209 = vpack.c.b16 %v1173, %v1172
    %v1210 = vpack.c.b16 %v1175, %v1174
    %v1211 = vpack.c.b16 %v1177, %v1176
    %v1212 = vpack.c.b16 %v1179, %v1178
    %v1213 = vpack.c.b16 %v1181, %v1180
    %v1214 = vpack.c.b16 %v1183, %v1182
    %v1215 = vpack.c.b16 %v1185, %v1184
    %v1216 = vpack.c.b16 %v1187, %v1186
    %v1217 = vpack.c.b16 %v1189, %v1188
    %v1218 = vpack.c.b16 %v1191, %v1190
    %v1219 = vpack.c.b16 %v1193, %v1192
    %v1220 = vpack.c.b16 %v1195, %v1194
    %v1221 = vpack.c.b16 %v1197, %v1196
    %1246 = vmatpush.bf16.msra.mxu0 %v1205
    %1247 = vmatpush.bf16.msra.mxu0 %v1204
    %1248 = vmatpush.bf16.msra.mxu0 %v1203
    %1249 = vmatpush.bf16.msra.mxu0 %v1202
    %1250 = vmatpush.bf16.msra.mxu0 %v1201
    %1251 = vmatpush.bf16.msra.mxu0 %v1200
    %1252 = vmatpush.bf16.msra.mxu0 %v1199
    %1253 = vmatpush.bf16.msra.mxu0 %v1198
    %1254 = vmatmul.bf16.gmra.mxu0 %v1047
    %v1255 = vpop.f32.mrf.mxu0
    %v1256 = vadd.f32 %v1100, %v1255
    %v1257 = vpop.f32.mrf.mxu0
    %1258 = vdwg.mxu0
    %1259 = vmatpush.bf16.msra.mxu0 %v1213
    %1260 = vmatpush.bf16.msra.mxu0 %v1212
    %1261 = vmatpush.bf16.msra.mxu0 %v1211
    %1262 = vmatpush.bf16.msra.mxu0 %v1210
    %1263 = vmatpush.bf16.msra.mxu0 %v1209
    %1264 = vmatpush.bf16.msra.mxu0 %v1208
    %1265 = vmatpush.bf16.msra.mxu0 %v1207
    %1266 = vmatpush.bf16.msra.mxu0 %v1206
    %1267 = vmatmul.bf16.gmra.mxu0 %v1048
    %v1268 = vpop.f32.mrf.mxu0
    %v1269 = vadd.f32 %v1256, %v1268
    %v1270 = vpop.f32.mrf.mxu0
    %1271 = vdwg.mxu0
    %1272 = vmatpush.bf16.msra.mxu0 %v1221
    %1273 = vmatpush.bf16.msra.mxu0 %v1220
    %1274 = vmatpush.bf16.msra.mxu0 %v1219
    %1275 = vmatpush.bf16.msra.mxu0 %v1218
    %1276 = vmatpush.bf16.msra.mxu0 %v1217
    %1277 = vmatpush.bf16.msra.mxu0 %v1216
    %1278 = vmatpush.bf16.msra.mxu0 %v1215
    %1279 = vmatpush.bf16.msra.mxu0 %v1214
    %1280 = vmatmul.bf16.gmra.mxu0 %v1049
    %v1281 = vpop.f32.mrf.mxu0
    %v1282 = vadd.f32 %v1269, %v1281
    %v1283 = vpop.f32.mrf.mxu0
    %1284 = vdwg.mxu0
    %v1285 = vtanh.pop %v1282
    %v1286 = vpack.c.bf16 %v1285, %v1285
    %1287 = vst [vmem:[#allocation13] sm:$0xf] %v1286
    // Predicated region
    $region54: #{actor_forward.1} parent=1 // pred_check
      _
    $region55: #{actor_forward.1} parent=1 // pred_check_branch
      %1289 = sbr.rel (0) target = $region57
    $region56: #{actor_forward.1} parent=1 // pred_region
      %1291 = vsyncadd [#allocation4], 0
      %s1293 = sshll.u32 [#allocation13], 4
      %s1294 = int_to_ptr.vmem [resolvable:$true] %s1293
      %s1295 = sshll.u32 %s7, 4
      %s1296 = int_to_ptr.hbm [resolvable:$true] %s1295
      %1298 = dma.vmem_to_hbm [thread:$0]  %s1294, 64, %s1296, [#allocation4]
    $region57: #{actor_forward.1} parent=1 // pred_fallthru
      _
    // Predicated region
    $region58: #{actor_forward.1} parent=1 // pred_check
      _
    $region59: #{actor_forward.1} parent=1 // pred_check_branch
      %1300 = sbr.rel (0) target = $region61
    $region60: #{actor_forward.1} parent=1 // pred_region
      %1302 = dma.done [#allocation4], 64
    $region61: #{actor_forward.1} parent=1 // pred_fallthru
      _
    %1303 = vsyncpa [#allocation3], 1
    %1304 = vsyncpa [#allocation6], 1
    %1305 = vsyncpa [#allocation9], 1
    %1306 = vsyncpa [#allocation12], 1
    %1307 = vsyncpa [#allocation4], 1

</llo_original>
